<compile_context>
chip_gen: v7x
topology: tpu7x:2x2x1
jax: 0.10.0
libtpu: 0.0.40
codegen_flags: <defaults>
</compile_context>

<pallas_src>
import functools

import jax
import jax.numpy as jnp
from jax import lax
from jax.experimental import pallas as pl
from jax.experimental.pallas import tpu as pltpu

# Finite stand-in for -inf: keeps online-softmax intermediates NaN-free. Fully-masked
# rows still end up NaN in the output (0/0), matching PyTorch masked_fill(-inf)+softmax.
_NEG_INF = -1e30


# --------------------------------------------------------------------------------------
# Kernel body
# --------------------------------------------------------------------------------------
def _flash_body(q_ref, k_ref, v_ref, mask_ref, o_ref, m_scr, l_scr, acc_scr, q_scr, *,
                inv_scale, mask_kind, kv_valid_len, pv_dtype):
    """One (batch, q-tile, kv-tile) grid step of flash attention with online softmax.

    Block shapes (leading batch dim of 1 squeezed via ref[0]):
      q_ref (1, TQ, D) | k_ref (1, TK, D) | v_ref (1, TK, Dv) | o_ref (1, TQ, Dv)
      mask_ref: (1, TQ//32, TK) int32 bit-planes ("bits") or (1, TQ, TK) int8 ("bytes")
      scratch: m (TQ,1) f32, l (TQ,1) f32, acc (TQ,Dv) f32, q_scr (TQ,D) input dtype
    """
    kv_idx = pl.program_id(2)

    @pl.when(kv_idx == 0)
    def _init():
        m_scr[...] = jnp.full_like(m_scr, _NEG_INF)
        l_scr[...] = jnp.zeros_like(l_scr)
        acc_scr[...] = jnp.zeros_like(acc_scr)
        # Scale q once per (b, q-tile) instead of once per kv step.
        q_scr[...] = q_ref[0] * inv_scale

    q = q_scr[...]                        # (TQ, D)  pre-scaled, input dtype
    k = k_ref[0]                          # (TK, D)
    v = v_ref[0]                          # (TK, Dv)

    # scores = q @ k^T as a contraction over D (no k transpose materialized). MXU
    # operands stay in the input dtype; f32 accumulation.
    s = lax.dot_general(q, k, dimension_numbers=(((1,), (1,)), ((), ())),
                        preferred_element_type=jnp.float32)            # (TQ, TK) f32

    # Online softmax. The shift uses the *unmasked* tile max; masked / padded
    # probabilities are zeroed after the exp instead of -inf-filling the scores
    # (saves one full (TQ, TK) select per kv step and is numerically equivalent).
    m_prev = m_scr[...]
    m_next = jnp.maximum(m_prev, jnp.max(s, axis=-1, keepdims=True))
    alpha = jnp.exp(m_prev - m_next)
    e = jnp.exp(s - m_next)                                             # (TQ, TK) f32

    if mask_kind == "bits":
        # 1 bit per (q, k) pair: bit b of packed row w covers query row b*(TQ//32) + w.
        words = mask_ref[0]                                             # (TQ//32, TK) i32
        pieces = [(words >> b) & 1 for b in range(32)]
        drop = jnp.concatenate(pieces, axis=0)                          # (TQ, TK) i32
        e = jnp.where(drop != 0, 0.0, e)
    elif mask_kind == "bytes":
        e = jnp.where(mask_ref[0] != 0, 0.0, e)

    if kv_valid_len is not None:
        # Zero contributions of zero-padded keys (non-divisible Lk).
        kpos = kv_idx * e.shape[1] + lax.broadcasted_iota(jnp.int32, e.shape, 1)
        e = jnp.where(kpos < kv_valid_len, e, 0.0)

    l_scr[...] = alpha * l_scr[...] + jnp.sum(e, axis=-1, keepdims=True)
    acc_scr[...] = alpha * acc_scr[...] + lax.dot_general(
        e.astype(pv_dtype), v.astype(pv_dtype),
        dimension_numbers=(((1,), (0,)), ((), ())),
        preferred_element_type=jnp.float32)
    m_scr[...] = m_next

    @pl.when(kv_idx == pl.num_programs(2) - 1)
    def _finalize():
        l = l_scr[...]
        inv_l = pl.reciprocal(l, approx=True)    # EUP vrcp seed (otherwise-idle slot)
        inv_l = inv_l * (2.0 - l * inv_l)        # one Newton step -> f32 accuracy
        o_ref[0] = (acc_scr[...] * inv_l).astype(o_ref.dtype)


def _kernel_nomask(q_ref, k_ref, v_ref, o_ref, m_scr, l_scr, acc_scr, q_scr, **kw):
    _flash_body(q_ref, k_ref, v_ref, None, o_ref, m_scr, l_scr, acc_scr, q_scr,
                mask_kind="none", **kw)


def _kernel_masked(q_ref, k_ref, v_ref, mask_ref, o_ref, m_scr, l_scr, acc_scr, q_scr,
                   *, mask_kind, **kw):
    _flash_body(q_ref, k_ref, v_ref, mask_ref, o_ref, m_scr, l_scr, acc_scr, q_scr,
                mask_kind=mask_kind, **kw)


# --------------------------------------------------------------------------------------
# Wrapper helpers
# --------------------------------------------------------------------------------------
def _round_up(x, m):
    return ((x + m - 1) // m) * m


def _pick_tile(extent, target, granule):
    """Largest granule-multiple divisor of `extent` in [target/4, target]; if none
    exists, return the granule-floored target (the caller zero-pads the extent)."""
    t = max(granule, (target // granule) * granule)
    lo = max(granule, t // 4)
    cand = t
    while cand >= lo:
        if extent % cand == 0:
            return cand
        cand -= granule
    return t


def _pack_mask_bitplanes(mask_bool, tq):
    """Pack a (B, Lq_pad, Lk_pad) bool mask to (B, Lq_pad//32, Lk_pad) int32, 1 bit per
    (q, k) pair.  Layout: within each TQ-row tile, bit b of packed row w covers query
    row b*(TQ//32) + w, so a (TQ//32, TK) block unpacks in-kernel with 32 shifts plus a
    single sublane concat."""
    bsz, lq_pad, lk_pad = mask_bool.shape
    tqb = tq // 32
    m = mask_bool.reshape(bsz, lq_pad // tq, 32, tqb, lk_pad).astype(jnp.int32)
    planes = [m[:, :, b] << b for b in range(32)]          # each (B, n_q, tqb, Lk_pad)
    packed = functools.reduce(jnp.bitwise_or, planes)
    return packed.reshape(bsz, lq_pad // 32, lk_pad)


def _vmem_limit_bytes(buffer_bytes):
    """Generation-aware VMEM limit: enough for our buffers + headroom for compiler
    temporaries, capped well under physical VMEM (64 MiB/core v7x, 128 MiB v5e/v6e)."""
    try:
        phys = int(pltpu.get_tpu_info().vmem_capacity_bytes)
    except Exception:
        phys = 64 * 1024 * 1024          # conservative default (v7x per-TensorCore)
    cap = (phys * 3) // 4
    want = int(buffer_bytes) + (16 << 20)
    return min(max(want, 32 << 20), cap)


# --------------------------------------------------------------------------------------
# Public entry point
# --------------------------------------------------------------------------------------
def scaled_dot_product_attention(q, k, v, scale, mask=None, *,
                                 q_tile=512, kv_tile=1024, pv_bf16=False):
    """Pallas flash-attention implementation of ScaledDotProductAttention.forward.

    q: (B, Lq, D), k: (B, Lk, D), v: (B, Lk, Dv), mask: optional (B, Lq, Lk) bool
    (True = masked out).  Returns (B, Lq, Dv) in q.dtype.
    """
    B, Lq, D = q.shape
    _, Lk, Dv = v.shape
    assert k.shape == (B, Lk, D), "k must be (B, Lk, D)"
    assert v.shape[0] == B, "v batch mismatch"
    if mask is not None:
        assert mask.shape == (B, Lq, Lk), "mask must be (B, Lq, Lk)"

    q_tile = max(int(q_tile), 32)
    kv_tile = max(int(kv_tile), 128)

    # ---- tiling: pad non-divisible extents rather than collapsing to one huge tile ----
    if Lq > q_tile:
        q_gran = 256 if (mask is not None and q_tile >= 256) else 32
        TQ = _pick_tile(Lq, q_tile, q_gran)
    else:
        TQ = _round_up(Lq, 32 if mask is not None else 8)
    TK = _pick_tile(Lk, kv_tile, 128) if Lk > kv_tile else _round_up(Lk, 128)

    Lq_pad = _round_up(Lq, TQ)
    Lk_pad = _round_up(Lk, TK)
    n_q, n_kv = Lq_pad // TQ, Lk_pad // TK
    grid = (B, n_q, n_kv)

    def pad_rows(x, rows):
        if x.shape[1] == rows:
            return x
        return jnp.pad(x, ((0, 0), (0, rows - x.shape[1]), (0, 0)))

    q_p = pad_rows(q, Lq_pad)
    k_p = pad_rows(k, Lk_pad)
    v_p = pad_rows(v, Lk_pad)
    kv_valid_len = Lk if Lk_pad != Lk else None       # zero padded keys in-kernel

    # Triple-buffer the streamed K/V/mask tiles once the kv axis is long enough.
    kv_depth = 3 if n_kv >= 3 else 2
    kv_pipe = dict(pipeline_mode=pl.Buffered(3)) if n_kv >= 3 else {}

    q_spec = pl.BlockSpec((1, TQ, D), lambda b, qi, ki: (b, qi, 0))
    k_spec = pl.BlockSpec((1, TK, D), lambda b, qi, ki: (b, ki, 0), **kv_pipe)
    v_spec = pl.BlockSpec((1, TK, Dv), lambda b, qi, ki: (b, ki, 0), **kv_pipe)
    # NOTE: when Dv < 128 the output minor dim lowers to masked partial stores; callers
    # that can fold heads so Dv is a multiple of 128 get lane-dense (faster) stores.
    o_spec = pl.BlockSpec((1, TQ, Dv), lambda b, qi, ki: (b, qi, 0))

    # ---- mask: 1 bit per (q, k) pair whenever the q tile allows it (8x less HBM
    # traffic than a byte mask); small / odd q tiles fall back to an int8 mask. ----
    mask_kind, mask_arg, m_spec = "none", None, None
    if mask is not None:
        mask_p = mask
        if (Lq_pad, Lk_pad) != (Lq, Lk):
            mask_p = jnp.pad(mask, ((0, 0), (0, Lq_pad - Lq), (0, Lk_pad - Lk)))
        if TQ % 256 == 0:
            mask_kind = "bits"
            mask_arg = _pack_mask_bitplanes(mask_p, TQ)    # (B, Lq_pad//32, Lk_pad) i32
            m_spec = pl.BlockSpec((1, TQ // 32, TK), lambda b, qi, ki: (b, qi, ki),
                                  **kv_pipe)
        else:
            mask_kind = "bytes"
            mask_arg = mask_p.astype(jnp.int8)
            m_spec = pl.BlockSpec((1, TQ, TK), lambda b, qi, ki: (b, qi, ki), **kv_pipe)

    # probabilities @ V in bf16 (f32 accumulate) if requested for f32 inputs.
    pv_dtype = jnp.bfloat16 if (pv_bf16 and v.dtype == jnp.float32) else v.dtype

    scratch = [
        pltpu.VMEM((TQ, 1), jnp.float32),    # running max  m
        pltpu.VMEM((TQ, 1), jnp.float32),    # running sum  l
        pltpu.VMEM((TQ, Dv), jnp.float32),   # f32 output accumulator
        pltpu.VMEM((TQ, D), q.dtype),        # pre-scaled q tile
    ]

    # ---- VMEM budget derived from the actual buffers, capped per generation ----
    isz = lambda dt: jnp.dtype(dt).itemsize
    buf_bytes = (
        2 * TQ * D * isz(q.dtype)
        + kv_depth * TK * D * isz(k.dtype)
        + kv_depth * TK * Dv * isz(v.dtype)
        + 2 * TQ * Dv * isz(q.dtype)
        + 2 * TQ * 4 + TQ * Dv * 4 + TQ * D * isz(q.dtype)
    )
    if mask_kind == "bits":
        buf_bytes += kv_depth * (TQ // 32) * TK * 4
    elif mask_kind == "bytes":
        buf_bytes += kv_depth * TQ * TK

    cparams = pltpu.CompilerParams(
        dimension_semantics=("parallel", "parallel", "arbitrary"),
        vmem_limit_bytes=_vmem_limit_bytes(buf_bytes),
    )

    mask_bytes = 0 if mask_arg is None else mask_arg.size * isz(mask_arg.dtype)
    cost = pl.CostEstimate(
        flops=2 * B * Lq_pad * Lk_pad * (D + Dv),
        transcendentals=B * Lq_pad * Lk_pad,
        bytes_accessed=(q.size * isz(q.dtype) + k.size * isz(k.dtype)
                        + v.size * isz(v.dtype) + B * Lq * Dv * isz(q.dtype)
                        + mask_bytes),
    )

    common = dict(inv_scale=1.0 / float(scale), kv_valid_len=kv_valid_len,
                  pv_dtype=pv_dtype)
    if mask is None:
        kernel = functools.partial(_kernel_nomask, **common)
        in_specs = [q_spec, k_spec, v_spec]
        args = (q_p, k_p, v_p)
    else:
        kernel = functools.partial(_kernel_masked, mask_kind=mask_kind, **common)
        in_specs = [q_spec, k_spec, v_spec, m_spec]
        args = (q_p, k_p, v_p, mask_arg)

    out = pl.pallas_call(
        kernel,
        out_shape=jax.ShapeDtypeStruct((B, Lq_pad, Dv), q.dtype),
        grid_spec=pltpu.PrefetchScalarGridSpec(
            num_scalar_prefetch=0,
            grid=grid,
            in_specs=in_specs,
            out_specs=o_spec,
            scratch_shapes=scratch,
        ),
        compiler_params=cparams,
        cost_estimate=cost,
    )(*args)

    return out[:, :Lq, :] if Lq_pad != Lq else out


# --------------------------------------------------------------------------------------
# Reference + tests
# --------------------------------------------------------------------------------------
def _reference(q, k, v, scale, mask=None):
    s = jnp.einsum("bqd,bkd->bqk", q.astype(jnp.float32), k.astype(jnp.float32)) / scale
    if mask is not None:
        s = jnp.where(mask, -jnp.inf, s)
    p = jax.nn.softmax(s, axis=2)
    return jnp.einsum("bqk,bkd->bqd", p, v.astype(jnp.float32))


if __name__ == "__main__":
    key = jax.random.PRNGKey(0)
    ks = jax.random.split(key, 8)

    # --- small shapes consistent with the module (batch=2, seq=8, hidden=32) ---
    B, L, D = 2, 8, 32
    scale = float(jnp.sqrt(jnp.float32(D)))
    q = jax.random.normal(ks[0], (B, L, D), dtype=jnp.float32)
    k = jax.random.normal(ks[1], (B, L, D), dtype=jnp.float32)
    v = jax.random.normal(ks[2], (B, L, D), dtype=jnp.float32)

    out = jax.block_until_ready(scaled_dot_product_attention(q, k, v, scale))
    assert jnp.allclose(out, _reference(q, k, v, scale), atol=2e-5, rtol=2e-5), \
        "unmasked mismatch"

    mask = jax.random.bernoulli(ks[3], p=0.3, shape=(B, L, L)).at[:, :, 0].set(False)
    out_m = jax.block_until_ready(scaled_dot_product_attention(q, k, v, scale, mask=mask))
    assert jnp.allclose(out_m, _reference(q, k, v, scale, mask=mask),
                        atol=2e-5, rtol=2e-5), "masked (byte-mask path) mismatch"

    # bf16 inputs feed the MXU as bf16 with f32 accumulation.
    qb, kb, vb = (x.astype(jnp.bfloat16) for x in (q, k, v))
    out_b = jax.block_until_ready(scaled_dot_product_attention(qb, kb, vb, scale))
    ref_b = _reference(qb, kb, vb, scale)
    assert jnp.allclose(out_b.astype(jnp.float32), ref_b, atol=5e-2, rtol=5e-2), \
        "bf16 mismatch"

    # --- larger tiled case: multiple q & kv tiles, bit-packed mask, Buffered(3)
    # streaming, and zero-padding of non-divisible Lq/Lk (1000 -> 1024). ---
    B2, L2, D2 = 2, 1000, 64
    scale2 = float(jnp.sqrt(jnp.float32(D2)))
    q2 = jax.random.normal(ks[4], (B2, L2, D2), dtype=jnp.float32)
    k2 = jax.random.normal(ks[5], (B2, L2, D2), dtype=jnp.float32)
    v2 = jax.random.normal(ks[6], (B2, L2, D2), dtype=jnp.float32)
    mask2 = jax.random.bernoulli(ks[7], p=0.3, shape=(B2, L2, L2)).at[:, :, 0].set(False)

    out2 = jax.block_until_ready(
        scaled_dot_product_attention(q2, k2, v2, scale2, mask=mask2, kv_tile=256))
    ref2 = _reference(q2, k2, v2, scale2, mask=mask2)
    assert jnp.allclose(out2, ref2, atol=1e-4, rtol=1e-4), "tiled packed-mask mismatch"

    out2u = jax.block_until_ready(
        scaled_dot_product_attention(q2, k2, v2, scale2, kv_tile=256))
    ref2u = _reference(q2, k2, v2, scale2)
    assert jnp.allclose(out2u, ref2u, atol=1e-4, rtol=1e-4), "tiled unmasked mismatch"

    print("KERNEL_OK")
</pallas_src>

<mosaic_0001>
module attributes {stable_mosaic.version = 11 : i64} {
  func.func @_kernel_nomask(%arg0: i32, %arg1: i32, %arg2: i32, %arg3: memref<1x8x32xf32, #tpu.memory_space<vmem>>, %arg4: memref<1x128x32xf32, #tpu.memory_space<vmem>>, %arg5: memref<1x128x32xf32, #tpu.memory_space<vmem>>, %arg6: memref<1x8x32xf32, #tpu.memory_space<vmem>>, %arg7: memref<8x1xf32, #tpu.memory_space<vmem>>, %arg8: memref<8x1xf32, #tpu.memory_space<vmem>>, %arg9: memref<8x32xf32, #tpu.memory_space<vmem>>, %arg10: memref<8x32xf32, #tpu.memory_space<vmem>>) attributes {dimension_semantics = [#tpu.dimension_semantics<parallel>, #tpu.dimension_semantics<parallel>, #tpu.dimension_semantics<arbitrary>], iteration_bounds = array<i64: 2, 1, 1>, scalar_prefetch = 0 : i64, scratch_operands = 4 : i64, tpu.core_type = #tpu.core_type<tc>, window_params = [{transform_indices = @transform_0, window_bounds = array<i64: 1, 8, 32>}, {transform_indices = @transform_1, window_bounds = array<i64: 1, 128, 32>}, {transform_indices = @transform_2, window_bounds = array<i64: 1, 128, 32>}, {transform_indices = @transform_3, window_bounds = array<i64: 1, 8, 32>}]} {
    %c0_i32 = arith.constant 0 : i32
    %0 = arith.cmpi eq, %arg2, %c0_i32 : i32
    %1 = arith.extui %0 : i1 to i32
    %c0_i32_0 = arith.constant 0 : i32
    %2 = arith.cmpi ne, %1, %c0_i32_0 : i32
    scf.if %2 {
      %cst_26 = arith.constant -1.000000e+30 : f32
      %42 = vector.broadcast %cst_26 : f32 to vector<8x1xf32>
      %c0_27 = arith.constant 0 : index
      %c0_28 = arith.constant 0 : index
      %43 = vector.load %arg7[%c0_27, %c0_28] : memref<8x1xf32, #tpu.memory_space<vmem>>, vector<8x1xf32>
      tpu.vector_store %arg7[%c0_27, %c0_28], %42 {strides = array<i32>} : memref<8x1xf32, #tpu.memory_space<vmem>>, vector<8x1xf32>,
      %cst_29 = arith.constant 0.000000e+00 : f32
      %44 = vector.broadcast %cst_29 : f32 to vector<8x1xf32>
      %c0_30 = arith.constant 0 : index
      %c0_31 = arith.constant 0 : index
      %45 = vector.load %arg8[%c0_30, %c0_31] : memref<8x1xf32, #tpu.memory_space<vmem>>, vector<8x1xf32>
      tpu.vector_store %arg8[%c0_30, %c0_31], %44 {strides = array<i32>} : memref<8x1xf32, #tpu.memory_space<vmem>>, vector<8x1xf32>,
      %cst_32 = arith.constant 0.000000e+00 : f32
      %46 = vector.broadcast %cst_32 : f32 to vector<8x32xf32>
      %c0_33 = arith.constant 0 : index
      %c0_34 = arith.constant 0 : index
      %47 = vector.load %arg9[%c0_33, %c0_34] : memref<8x32xf32, #tpu.memory_space<vmem>>, vector<8x32xf32>
      tpu.vector_store %arg9[%c0_33, %c0_34], %46 {strides = array<i32>} : memref<8x32xf32, #tpu.memory_space<vmem>>, vector<8x32xf32>,
      %c0_35 = arith.constant 0 : index
      %c0_36 = arith.constant 0 : index
      %c0_37 = arith.constant 0 : index
      %48 = vector.load %arg3[%c0_35, %c0_36, %c0_37] : memref<1x8x32xf32, #tpu.memory_space<vmem>>, vector<1x8x32xf32>
      %49 = vector.shape_cast %48 : vector<1x8x32xf32> to vector<8x32xf32>
      %cst_38 = arith.constant 0.176776692 : f32
      %50 = vector.broadcast %cst_38 : f32 to vector<8x32xf32>
      %51 = arith.mulf %49, %50 : vector<8x32xf32>
      %c0_39 = arith.constant 0 : index
      %c0_40 = arith.constant 0 : index
      %52 = vector.load %arg10[%c0_39, %c0_40] : memref<8x32xf32, #tpu.memory_space<vmem>>, vector<8x32xf32>
      tpu.vector_store %arg10[%c0_39, %c0_40], %51 {strides = array<i32>} : memref<8x32xf32, #tpu.memory_space<vmem>>, vector<8x32xf32>,
    } else {
    }
    %c0 = arith.constant 0 : index
    %c0_1 = arith.constant 0 : index
    %3 = vector.load %arg10[%c0, %c0_1] : memref<8x32xf32, #tpu.memory_space<vmem>>, vector<8x32xf32>
    %c0_2 = arith.constant 0 : index
    %c0_3 = arith.constant 0 : index
    %c0_4 = arith.constant 0 : index
    %4 = vector.load %arg4[%c0_2, %c0_3, %c0_4] : memref<1x128x32xf32, #tpu.memory_space<vmem>>, vector<1x128x32xf32>
    %5 = vector.shape_cast %4 : vector<1x128x32xf32> to vector<128x32xf32>
    %c0_5 = arith.constant 0 : index
    %c0_6 = arith.constant 0 : index
    %c0_7 = arith.constant 0 : index
    %6 = vector.load %arg5[%c0_5, %c0_6, %c0_7] : memref<1x128x32xf32, #tpu.memory_space<vmem>>, vector<1x128x32xf32>
    %7 = vector.shape_cast %6 : vector<1x128x32xf32> to vector<128x32xf32>
    %cst = arith.constant dense<0.000000e+00> : vector<8x128xf32>
    %8 = tpu.matmul %3, %5, %cst {dimension_numbers = #tpu.dot_dimension_numbers<[1], [1], [0], [0], [0, 0, 1, 0], [], []>} : vector<8x32xf32>, vector<128x32xf32>, vector<8x128xf32> -> vector<8x128xf32>
    %c0_8 = arith.constant 0 : index
    %c0_9 = arith.constant 0 : index
    %9 = vector.load %arg7[%c0_8, %c0_9] : memref<8x1xf32, #tpu.memory_space<vmem>>, vector<8x1xf32>
    %cst_10 = arith.constant dense<0xFF800000> : vector<8xf32>
    %10 = vector.multi_reduction <maximumf>, %8, %cst_10 [1] : vector<8x128xf32> to vector<8xf32>
    %11 = vector.shape_cast %10 : vector<8xf32> to vector<8x1xf32>
    %12 = arith.maximumf %9, %11 : vector<8x1xf32>
    %13 = arith.subf %9, %12 : vector<8x1xf32>
    %14 = math.exp %13 : vector<8x1xf32>
    %15 = vector.broadcast %12 : vector<8x1xf32> to vector<8x128xf32>
    %16 = arith.subf %8, %15 : vector<8x128xf32>
    %17 = math.exp %16 : vector<8x128xf32>
    %c128_i32 = arith.constant 128 : i32
    %18 = arith.muli %arg2, %c128_i32 : i32
    %19 = tpu.iota {dimensions = array<i32: 1>} : vector<8x128xi32>
    %20 = vector.broadcast %18 : i32 to vector<8x128xi32>
    %21 = arith.addi %20, %19 : vector<8x128xi32>
    %c8_i32 = arith.constant 8 : i32
    %22 = vector.broadcast %c8_i32 : i32 to vector<8x128xi32>
    %23 = arith.cmpi slt, %21, %22 : vector<8x128xi32>
    %cst_11 = arith.constant 0.000000e+00 : f32
    %24 = vector.broadcast %cst_11 : f32 to vector<8x128xf32>
    %25 = arith.select %23, %17, %24 : vector<8x128xi1>, vector<8x128xf32>
    %c0_12 = arith.constant 0 : index
    %c0_13 = arith.constant 0 : index
    %26 = vector.load %arg8[%c0_12, %c0_13] : memref<8x1xf32, #tpu.memory_space<vmem>>, vector<8x1xf32>
    %27 = arith.mulf %14, %26 : vector<8x1xf32>
    %cst_14 = arith.constant dense<0.000000e+00> : vector<8xf32>
    %28 = vector.multi_reduction <add>, %25, %cst_14 [1] : vector<8x128xf32> to vector<8xf32>
    %29 = vector.shape_cast %28 : vector<8xf32> to vector<8x1xf32>
    %30 = arith.addf %27, %29 : vector<8x1xf32>
    %c0_15 = arith.constant 0 : index
    %c0_16 = arith.constant 0 : index
    %31 = vector.load %arg8[%c0_15, %c0_16] : memref<8x1xf32, #tpu.memory_space<vmem>>, vector<8x1xf32>
    tpu.vector_store %arg8[%c0_15, %c0_16], %30 {strides = array<i32>} : memref<8x1xf32, #tpu.memory_space<vmem>>, vector<8x1xf32>,
    %c0_17 = arith.constant 0 : index
    %c0_18 = arith.constant 0 : index
    %32 = vector.load %arg9[%c0_17, %c0_18] : memref<8x32xf32, #tpu.memory_space<vmem>>, vector<8x32xf32>
    %33 = vector.broadcast %14 : vector<8x1xf32> to vector<8x32xf32>
    %34 = arith.mulf %33, %32 : vector<8x32xf32>
    %cst_19 = arith.constant dense<0.000000e+00> : vector<8x32xf32>
    %35 = tpu.matmul %25, %7, %cst_19 {dimension_numbers = #tpu.dot_dimension_numbers<[1], [0], [0], [1], [0, 0, 1, 1], [], []>} : vector<8x128xf32>, vector<128x32xf32>, vector<8x32xf32> -> vector<8x32xf32>
    %36 = arith.addf %34, %35 : vector<8x32xf32>
    %c0_20 = arith.constant 0 : index
    %c0_21 = arith.constant 0 : index
    %37 = vector.load %arg9[%c0_20, %c0_21] : memref<8x32xf32, #tpu.memory_space<vmem>>, vector<8x32xf32>
    tpu.vector_store %arg9[%c0_20, %c0_21], %36 {strides = array<i32>} : memref<8x32xf32, #tpu.memory_space<vmem>>, vector<8x32xf32>,
    %c0_22 = arith.constant 0 : index
    %c0_23 = arith.constant 0 : index
    %38 = vector.load %arg7[%c0_22, %c0_23] : memref<8x1xf32, #tpu.memory_space<vmem>>, vector<8x1xf32>
    tpu.vector_store %arg7[%c0_22, %c0_23], %12 {strides = array<i32>} : memref<8x1xf32, #tpu.memory_space<vmem>>, vector<8x1xf32>,
    %c0_i32_24 = arith.constant 0 : i32
    %39 = arith.cmpi eq, %arg2, %c0_i32_24 : i32
    %40 = arith.extui %39 : i1 to i32
    %c0_i32_25 = arith.constant 0 : i32
    %41 = arith.cmpi ne, %40, %c0_i32_25 : i32
    scf.if %41 {
      %c0_26 = arith.constant 0 : index
      %c0_27 = arith.constant 0 : index
      %42 = vector.load %arg8[%c0_26, %c0_27] : memref<8x1xf32, #tpu.memory_space<vmem>>, vector<8x1xf32>
      %43 = tpu.reciprocal %42 {approx = true} : vector<8x1xf32> -> vector<8x1xf32>
      %44 = arith.mulf %42, %43 : vector<8x1xf32>
      %cst_28 = arith.constant 2.000000e+00 : f32
      %45 = vector.broadcast %cst_28 : f32 to vector<8x1xf32>
      %46 = arith.subf %45, %44 : vector<8x1xf32>
      %47 = arith.mulf %43, %46 : vector<8x1xf32>
      %c0_29 = arith.constant 0 : index
      %c0_30 = arith.constant 0 : index
      %48 = vector.load %arg9[%c0_29, %c0_30] : memref<8x32xf32, #tpu.memory_space<vmem>>, vector<8x32xf32>
      %49 = vector.broadcast %47 : vector<8x1xf32> to vector<8x32xf32>
      %50 = arith.mulf %48, %49 : vector<8x32xf32>
      %c0_31 = arith.constant 0 : index
      %c0_32 = arith.constant 0 : index
      %c0_33 = arith.constant 0 : index
      %51 = vector.load %arg6[%c0_31, %c0_32, %c0_33] : memref<1x8x32xf32, #tpu.memory_space<vmem>>, vector<1x8x32xf32>
      %52 = vector.shape_cast %51 : vector<1x8x32xf32> to vector<8x32xf32>
      %53 = vector.shape_cast %50 : vector<8x32xf32> to vector<1x8x32xf32>
      tpu.vector_store %arg6[%c0_31, %c0_32, %c0_33], %53 {strides = array<i32>} : memref<1x8x32xf32, #tpu.memory_space<vmem>>, vector<1x8x32xf32>,
    } else {
    }
    return
  }
  func.func @transform_0(%arg0: i32, %arg1: i32, %arg2: i32) -> (i32, i32, i32) {
    %c0_i32 = arith.constant 0 : i32
    %c0_i32_0 = arith.constant 0 : i32
    return %arg0, %arg1, %c0_i32 : i32, i32, i32
  }
  func.func @transform_1(%arg0: i32, %arg1: i32, %arg2: i32) -> (i32, i32, i32) {
    %c0_i32 = arith.constant 0 : i32
    %c0_i32_0 = arith.constant 0 : i32
    return %arg0, %arg2, %c0_i32 : i32, i32, i32
  }
  func.func @transform_2(%arg0: i32, %arg1: i32, %arg2: i32) -> (i32, i32, i32) {
    %c0_i32 = arith.constant 0 : i32
    %c0_i32_0 = arith.constant 0 : i32
    return %arg0, %arg2, %c0_i32 : i32, i32, i32
  }
  func.func @transform_3(%arg0: i32, %arg1: i32, %arg2: i32) -> (i32, i32, i32) {
    %c0_i32 = arith.constant 0 : i32
    %c0_i32_0 = arith.constant 0 : i32
    return %arg0, %arg1, %c0_i32 : i32, i32, i32
  }
}

</mosaic_0001>

<llo_original>
// kernel: tpu_custom_call.1
$region0: #{tpu_custom_call.1}
  #allocation0 [shape = 'u32[]', space=smem, size = 0x4, offset = 0x4, fixed_abs, tag = 'smem constant byte address 0x4 - core index']
  #allocation1 [shape = 'u32[144,128]{1,0:T(1,128)}', space=vmem, size = 0x12000, scoped, tag = 'internal scratch']
  #allocation2 [shape = 'f32[8,1]{1,0:T(8,128)}', space=vmem, size = 0x1000, scoped, tag = 'scratch operand']
  #allocation3 [shape = 'f32[8,1]{1,0:T(8,128)}', space=vmem, size = 0x1000, scoped, tag = 'scratch operand']
  #allocation4 [shape = 'f32[8,32]{1,0:T(8,128)}', space=vmem, size = 0x1000, scoped, tag = 'scratch operand']
  #allocation5 [shape = 'f32[8,32]{1,0:T(8,128)}', space=vmem, size = 0x1000, scoped, tag = 'scratch operand']
  %s0 = inlined_call_operand.vmem [shape: f32[2,8,32], index: 0, kind: input, shape index: {}]
  %s1 = inlined_call_operand.vmem [shape: f32[2,128,32], index: 1, kind: input, shape index: {}]
  %s2 = inlined_call_operand.vmem [shape: f32[2,128,32], index: 2, kind: input, shape index: {}]
  %s3 = inlined_call_operand.hbm [shape: f32[2,8,32], index: 3, kind: output, shape index: {}]
  %s4 = sld [smem:[#allocation0]]
  $region53: #{tpu_custom_call.1} parent=0
    _
  %s6 = ssub.s32 1, %s4
  %s7 = scalar_select 0, %s6, %s4
  $region1: #{tpu_custom_call.1} parent=0
    #allocation6 [shape = 'u8[8192]{0}', space=vmem, size = 0x2000, scoped, tag = 'output window, operand 0']
    #allocation7 [shape = 's32[2]{0}', space=sflag, size = 0x8, scoped, tag = 'scoped memory for tpu_custom_call.1']
    %8 = vsyncpa [#allocation7], 0
    %s9 = scalar_lea.sflag [#allocation7], 1
    %10 = vsyncpa %s9, 0
    loop: start=0, step=1, limit=4
    $region2: #{tpu_custom_call.1} parent=1 // loop_pre_header
      _
    $region3: #{tpu_custom_call.1} parent=1 // loop_header
      %s12 = sphi 0, %s16
      %p13 = scmp.ge.s32.totalorder %s12, 4
      %s19 = sphi 0, %s38
      %s20 = sphi 0, %s34
      %s21 = sphi 0, %s30
      %s22 = sphi 0, %s19
      %s23 = sphi 0, %s20
      %s24 = sphi 0, %s21
      %s25 = sphi 0, %s22
      %s26 = sphi 0, %s23
      %s27 = sphi 0, %s24
      %s43 = sphi 0, %s45
      %s46 = sphi 0, %s43
      %s47 = sphi 0, %s46
      %s63 = sphi 0, %s47
      %s71 = sphi 0, %s73
      %s74 = sphi 0, %s71
      %s75 = sphi 0, %s74
      %s91 = sphi 0, %s75
      %s99 = sphi 0, %s101
      %s102 = sphi 0, %s99
      %s103 = sphi 0, %s102
      %s119 = sphi 0, %s103
      %s127 = sphi 0, %s129
      %s130 = sphi 0, %s127
      %s131 = sphi 0, %s130
      %s147 = sphi 0, %s131
    $region4: #{tpu_custom_call.1} parent=1 // loop_header_branch
      %15 = sbr.rel (%p13) target = $region8
    $region5: #{tpu_custom_call.1} parent=1 // loop_body
      %s17 = ssub.s32 %s12, 1
      %s18 = ssub.s32 %s12, 2
      %s28 = sadd.s32 1, %s21
      %p29 = scmp.ge.s32.totalorder %s28, 1
      %s30 = scalar_select %p29, 0, %s28
      %s31 = sadd.s32 1, %s20
      %s32 = scalar_select %p29, %s31, %s20
      %p33 = scmp.ge.s32.totalorder %s32, 1
      %s34 = scalar_select %p33, 0, %s32
      %s35 = sadd.s32 1, %s19
      %s36 = scalar_select %p33, %s35, %s19
      %p37 = scmp.ge.s32.totalorder %s36, 2
      %s38 = scalar_select %p37, 0, %s36
      %s39 = ssub.s32 %s19, %s38
      %s40 = ssub.s32 %s20, %s34
      %s41 = sor.u32 %s39, %s40
      %p42 = scmp.eq.s32.totalorder %s41, 0
      %s44 = sadd.s32 %s43, 1
      %s45 = scalar_select %p42, %s43, %s44
      %p48 = pneg %p42
      %p49 = scmp.eq.s32.totalorder %s12, 1
      %p50 = por %p48, %p49
      %p51 = scmp.ne.s32.totalorder %s43, %s46
      %p52 = scmp.eq.s32.totalorder %s12, 0
      %p53 = por %p51, %p52
      %p54 = scmp.ne.s32.totalorder %s43, %s46
      %p55 = scmp.eq.s32.totalorder %s17, 1
      %p56 = por %p54, %p55
      %p57 = scmp.ne.s32.totalorder %s46, %s47
      %p58 = scmp.eq.s32.totalorder %s17, 0
      %p59 = por %p57, %p58
      %p60 = scmp.ne.s32.totalorder %s46, %s47
      %p61 = scmp.eq.s32.totalorder %s18, 1
      %p62 = por %p60, %p61
      %p64 = scmp.ne.s32.totalorder %s47, %s63
      %p65 = scmp.eq.s32.totalorder %s18, 0
      %p66 = por %p64, %p65
      %s67 = ssub.s32 %s19, %s38
      %s68 = ssub.s32 %s21, %s30
      %s69 = sor.u32 %s67, %s68
      %p70 = scmp.eq.s32.totalorder %s69, 0
      %s72 = sadd.s32 %s71, 1
      %s73 = scalar_select %p70, %s71, %s72
      %p76 = pneg %p70
      %p77 = scmp.eq.s32.totalorder %s12, 1
      %p78 = por %p76, %p77
      %p79 = scmp.ne.s32.totalorder %s71, %s74
      %p80 = scmp.eq.s32.totalorder %s12, 0
      %p81 = por %p79, %p80
      %p82 = scmp.ne.s32.totalorder %s71, %s74
      %p83 = scmp.eq.s32.totalorder %s17, 1
      %p84 = por %p82, %p83
      %p85 = scmp.ne.s32.totalorder %s74, %s75
      %p86 = scmp.eq.s32.totalorder %s17, 0
      %p87 = por %p85, %p86
      %p88 = scmp.ne.s32.totalorder %s74, %s75
      %p89 = scmp.eq.s32.totalorder %s18, 1
      %p90 = por %p88, %p89
      %p92 = scmp.ne.s32.totalorder %s75, %s91
      %p93 = scmp.eq.s32.totalorder %s18, 0
      %p94 = por %p92, %p93
      %s95 = ssub.s32 %s19, %s38
      %s96 = ssub.s32 %s21, %s30
      %s97 = sor.u32 %s95, %s96
      %p98 = scmp.eq.s32.totalorder %s97, 0
      %s100 = sadd.s32 %s99, 1
      %s101 = scalar_select %p98, %s99, %s100
      %p104 = pneg %p98
      %p105 = scmp.eq.s32.totalorder %s12, 1
      %p106 = por %p104, %p105
      %p107 = scmp.ne.s32.totalorder %s99, %s102
      %p108 = scmp.eq.s32.totalorder %s12, 0
      %p109 = por %p107, %p108
      %p110 = scmp.ne.s32.totalorder %s99, %s102
      %p111 = scmp.eq.s32.totalorder %s17, 1
      %p112 = por %p110, %p111
      %p113 = scmp.ne.s32.totalorder %s102, %s103
      %p114 = scmp.eq.s32.totalorder %s17, 0
      %p115 = por %p113, %p114
      %p116 = scmp.ne.s32.totalorder %s102, %s103
      %p117 = scmp.eq.s32.totalorder %s18, 1
      %p118 = por %p116, %p117
      %p120 = scmp.ne.s32.totalorder %s103, %s119
      %p121 = scmp.eq.s32.totalorder %s18, 0
      %p122 = por %p120, %p121
      %s123 = ssub.s32 %s19, %s38
      %s124 = ssub.s32 %s20, %s34
      %s125 = sor.u32 %s123, %s124
      %p126 = scmp.eq.s32.totalorder %s125, 0
      %s128 = sadd.s32 %s127, 1
      %s129 = scalar_select %p126, %s127, %s128
      %p132 = pneg %p126
      %p133 = scmp.eq.s32.totalorder %s12, 1
      %p134 = por %p132, %p133
      %p135 = scmp.ne.s32.totalorder %s127, %s130
      %p136 = scmp.eq.s32.totalorder %s12, 0
      %p137 = por %p135, %p136
      %p138 = scmp.ne.s32.totalorder %s127, %s130
      %p139 = scmp.eq.s32.totalorder %s17, 1
      %p140 = por %p138, %p139
      %p141 = scmp.ne.s32.totalorder %s130, %s131
      %p142 = scmp.eq.s32.totalorder %s17, 0
      %p143 = por %p141, %p142
      %p144 = scmp.ne.s32.totalorder %s130, %s131
      %p145 = scmp.eq.s32.totalorder %s18, 1
      %p146 = por %p144, %p145
      %p148 = scmp.ne.s32.totalorder %s131, %s147
      %p149 = scmp.eq.s32.totalorder %s18, 0
      %p150 = por %p148, %p149
      %p151 = scmp.le.s32.totalorder 1, %s12
      %p152 = scmp.lt.s32.totalorder %s12, 3
      %p153 = pnand %p151, %p152
      %p154 = pneg %p153
      // Predicated region
      $region9: #{tpu_custom_call.1} parent=5 // pred_check
        _
      $region10: #{tpu_custom_call.1} parent=5 // pred_check_branch
        %156 = sbr.rel (%p153) target = $region12
      $region11: #{tpu_custom_call.1} parent=5 // pred_region
        %s157 = ssub.s32 %s12, 1
      $region12: #{tpu_custom_call.1} parent=5 // pred_fallthru
        _
      %p158 = scmp.lt.s32.totalorder %s12, 2
      // Predicated region
      $region13: #{tpu_custom_call.1} parent=5 // pred_check
        %p159 = pneg %p158
      $region14: #{tpu_custom_call.1} parent=5 // pred_check_branch
        %161 = sbr.rel (%p159) target = $region16
      $region15: #{tpu_custom_call.1} parent=5 // pred_region
        // Predicated region
        $region17: #{tpu_custom_call.1} parent=15 // pred_check
          %p162 = pneg %p53
        $region18: #{tpu_custom_call.1} parent=15 // pred_check_branch
          %164 = sbr.rel (%p162) target = $region20
        $region19: #{tpu_custom_call.1} parent=15 // pred_region
          %p165 = scmp.lt.s32.totalorder %s19, 1
          %s166 = scalar_select %p165, %s19, 1
          %p167 = scmp.lt.s32.totalorder %s20, 0
          %s168 = scalar_select %p167, %s20, 0
          %s169 = sadd.s32 %s168, %s166
          %s170 = smul.addr %s169, 8
          %s171 = scalar_lea.vmem %s0, %s170
        $region20: #{tpu_custom_call.1} parent=15 // pred_fallthru
          _
        // Predicated region
        $region21: #{tpu_custom_call.1} parent=15 // pred_check
          %p172 = pneg %p81
        $region22: #{tpu_custom_call.1} parent=15 // pred_check_branch
          %174 = sbr.rel (%p172) target = $region24
        $region23: #{tpu_custom_call.1} parent=15 // pred_region
          %s175 = smul.u32 16, %s21
          %p176 = scmp.lt.s32.totalorder %s19, 1
          %s177 = scalar_select %p176, %s19, 1
          %p178 = scmp.lt.s32.totalorder %s175, 15
          %s179 = scalar_select %p178, %s175, 15
          %s180 = smul.addr %s177, 16
          %s181 = sadd.s32 %s179, %s180
          %s182 = smul.addr %s181, 8
          %s183 = scalar_lea.vmem %s1, %s182
          %s184 = smul.u32 16, %s21
        $region24: #{tpu_custom_call.1} parent=15 // pred_fallthru
          _
        // Predicated region
        $region25: #{tpu_custom_call.1} parent=15 // pred_check
          %p185 = pneg %p109
        $region26: #{tpu_custom_call.1} parent=15 // pred_check_branch
          %187 = sbr.rel (%p185) target = $region28
        $region27: #{tpu_custom_call.1} parent=15 // pred_region
          %s188 = smul.u32 16, %s21
          %p189 = scmp.lt.s32.totalorder %s19, 1
          %s190 = scalar_select %p189, %s19, 1
          %p191 = scmp.lt.s32.totalorder %s188, 15
          %s192 = scalar_select %p191, %s188, 15
          %s193 = smul.addr %s190, 16
          %s194 = sadd.s32 %s192, %s193
          %s195 = smul.addr %s194, 8
          %s196 = scalar_lea.vmem %s2, %s195
          %s197 = smul.u32 16, %s21
        $region28: #{tpu_custom_call.1} parent=15 // pred_fallthru
          _
      $region16: #{tpu_custom_call.1} parent=5 // pred_fallthru
        _
      %p198 = scmp.le.s32.totalorder 1, %s12
      %p199 = scmp.lt.s32.totalorder %s12, 3
      %p200 = pnand %p198, %p199
      %p201 = pneg %p200
      // Predicated region
      $region29: #{tpu_custom_call.1} parent=5 // pred_check
        _
      $region30: #{tpu_custom_call.1} parent=5 // pred_check_branch
        %203 = sbr.rel (%p200) target = $region32
      $region31: #{tpu_custom_call.1} parent=5 // pred_region
        %s204 = ssub.s32 %s12, 1
        %p205 = scmp.lt.s32.totalorder %s22, 1
        %s206 = scalar_select %p205, %s22, 1
        %p207 = scmp.lt.s32.totalorder %s23, 0
        %s208 = scalar_select %p207, %s23, 0
        %s209 = sadd.s32 %s208, %s206
        %s210 = smul.addr %s209, 8
        %s211 = scalar_lea.vmem %s0, %s210
        %p212 = pneg %p59
        %p213 = pneg %p56
        %s214 = smul.u32 16, %s24
        %p215 = scmp.lt.s32.totalorder %s22, 1
        %s216 = scalar_select %p215, %s22, 1
        %p217 = scmp.lt.s32.totalorder %s214, 15
        %s218 = scalar_select %p217, %s214, 15
        %s219 = smul.addr %s216, 16
        %s220 = sadd.s32 %s218, %s219
        %s221 = smul.addr %s220, 8
        %s222 = scalar_lea.vmem %s1, %s221
        %p223 = pneg %p87
        %p224 = pneg %p84
        %s225 = smul.u32 16, %s24
        %p226 = scmp.lt.s32.totalorder %s22, 1
        %s227 = scalar_select %p226, %s22, 1
        %p228 = scmp.lt.s32.totalorder %s225, 15
        %s229 = scalar_select %p228, %s225, 15
        %s230 = smul.addr %s227, 16
        %s231 = sadd.s32 %s229, %s230
        %s232 = smul.addr %s231, 8
        %s233 = scalar_lea.vmem %s2, %s232
        %p234 = pneg %p115
        %p235 = pneg %p112
        %p236 = pneg %p143
        %p237 = pneg %p140
        %s238 = sand.u32 %s130, 1
        %s239 = scalar_lea.sflag [#allocation7], %s238
        %s240 = sand.u32 %s130, 1
        %s241 = smul.addr %s240, 8
        %s242 = scalar_lea.vmem [#allocation6], %s241
        %p243 = scmp.lt.s32.totalorder %s22, 1
        %s244 = scalar_select %p243, %s22, 1
        %p245 = scmp.lt.s32.totalorder %s23, 0
        %s246 = scalar_select %p245, %s23, 0
        %s247 = sadd.s32 %s246, %s244
        %s248 = smul.addr %s247, 8
        %s249 = scalar_lea.vmem %s0, %s248
        %s250 = smul.u32 16, %s24
        %p251 = scmp.lt.s32.totalorder %s22, 1
        %s252 = scalar_select %p251, %s22, 1
        %p253 = scmp.lt.s32.totalorder %s250, 15
        %s254 = scalar_select %p253, %s250, 15
        %s255 = smul.addr %s252, 16
        %s256 = sadd.s32 %s254, %s255
        %s257 = smul.addr %s256, 8
        %s258 = scalar_lea.vmem %s1, %s257
        %s259 = smul.u32 16, %s24
        %s260 = smul.u32 16, %s24
        %p261 = scmp.lt.s32.totalorder %s22, 1
        %s262 = scalar_select %p261, %s22, 1
        %p263 = scmp.lt.s32.totalorder %s260, 15
        %s264 = scalar_select %p263, %s260, 15
        %s265 = smul.addr %s262, 16
        %s266 = sadd.s32 %s264, %s265
        %s267 = smul.addr %s266, 8
        %s268 = scalar_lea.vmem %s2, %s267
        %s269 = smul.u32 16, %s24
        %p270 = scmp.eq.s32.totalorder %s24, 0
        // Predicated region
        $region33: #{tpu_custom_call.1} parent=31 // pred_check
          %p271 = pneg %p270
        $region34: #{tpu_custom_call.1} parent=31 // pred_check_branch
          %273 = sbr.rel (%p271) target = $region36
        $region35: #{tpu_custom_call.1} parent=31 // pred_region
          %vm274 = vcmask 7168
          %275 = vst.msk [vmem:[#allocation2] sm:$0xff] %vm274, -1e+30
          %276 = vst.msk [vmem:[#allocation3] sm:$0xff] %vm274, 0.0
          %vm277 = vcmask 261120
          %278 = vst.msk [vmem:[#allocation4] sm:$0xff] %vm277, 0.0
          %v279 = vld [vmem:[%s249] sm:$0xff]
          %v280 = vmul.f32 %v279, 0.17677669
          %281 = vst.msk [vmem:[#allocation5] sm:$0xff] %vm277, %v280
        $region36: #{tpu_custom_call.1} parent=31 // pred_fallthru
          _
        %v282 = vld [vmem:[#allocation5] sm:$0xff]
        %v283 = vld [vmem:[%s258] sm:$0xff]
        %v284 = vld [vmem:[%s258 + $0x8] sm:$0xff]
        %v285 = vld [vmem:[%s258 + $0x10] sm:$0xff]
        %v286 = vld [vmem:[%s258 + $0x18] sm:$0xff]
        %v287 = vld [vmem:[%s258 + $0x20] sm:$0xff]
        %v288 = vld [vmem:[%s258 + $0x28] sm:$0xff]
        %v289 = vld [vmem:[%s258 + $0x30] sm:$0xff]
        %v290 = vld [vmem:[%s258 + $0x38] sm:$0xff]
        %v291 = vld [vmem:[%s258 + $0x40] sm:$0xff]
        %v292 = vld [vmem:[%s258 + $0x48] sm:$0xff]
        %v293 = vld [vmem:[%s258 + $0x50] sm:$0xff]
        %v294 = vld [vmem:[%s258 + $0x58] sm:$0xff]
        %v295 = vld [vmem:[%s258 + $0x60] sm:$0xff]
        %v296 = vld [vmem:[%s258 + $0x68] sm:$0xff]
        %v297 = vld [vmem:[%s258 + $0x70] sm:$0xff]
        %v298 = vld [vmem:[%s258 + $0x78] sm:$0xff]
        %v299 = vld [vmem:[%s268] sm:$0xff]
        %v300 = vld [vmem:[%s268 + $0x8] sm:$0xff]
        %v301 = vld [vmem:[%s268 + $0x10] sm:$0xff]
        %v302 = vld [vmem:[%s268 + $0x18] sm:$0xff]
        %v303 = vld [vmem:[%s268 + $0x20] sm:$0xff]
        %v304 = vld [vmem:[%s268 + $0x28] sm:$0xff]
        %v305 = vld [vmem:[%s268 + $0x30] sm:$0xff]
        %v306 = vld [vmem:[%s268 + $0x38] sm:$0xff]
        %v307 = vld [vmem:[%s268 + $0x40] sm:$0xff]
        %v308 = vld [vmem:[%s268 + $0x48] sm:$0xff]
        %v309 = vld [vmem:[%s268 + $0x50] sm:$0xff]
        %v310 = vld [vmem:[%s268 + $0x58] sm:$0xff]
        %v311 = vld [vmem:[%s268 + $0x60] sm:$0xff]
        %v312 = vld [vmem:[%s268 + $0x68] sm:$0xff]
        %v313 = vld [vmem:[%s268 + $0x70] sm:$0xff]
        %v314 = vld [vmem:[%s268 + $0x78] sm:$0xff]
        %vm315 = vcmask 261120
        %v317 = vsel %vm315, %v282, 0
        %v320 = vsel %vm315, %v283, 0
        %v323 = vsel %vm315, %v284, 0
        %v326 = vsel %vm315, %v285, 0
        %v329 = vsel %vm315, %v286, 0
        %v332 = vsel %vm315, %v287, 0
        %v335 = vsel %vm315, %v288, 0
        %v338 = vsel %vm315, %v289, 0
        %v341 = vsel %vm315, %v290, 0
        %v344 = vsel %vm315, %v291, 0
        %v347 = vsel %vm315, %v292, 0
        %v350 = vsel %vm315, %v293, 0
        %v353 = vsel %vm315, %v294, 0
        %v356 = vsel %vm315, %v295, 0
        %v359 = vsel %vm315, %v296, 0
        %v362 = vsel %vm315, %v297, 0
        %v365 = vsel %vm315, %v298, 0
        %367 = vmatprep.subr.mxu0 0.0
        %368 = vmatpush1.xpose.msra.mxu0 %v320
        %369 = vmatprep.subr.mxu0 0.0
        %370 = vmatpush1.xpose.msra.mxu0 %v323
        %371 = vmatprep.subr.mxu0 0.0
        %372 = vmatpush1.xpose.msra.mxu0 %v326
        %373 = vmatprep.subr.mxu0 0.0
        %374 = vmatpush1.xpose.msra.mxu0 %v329
        %375 = vmatprep.subr.mxu0 0.0
        %376 = vmatpush1.xpose.msra.mxu0 %v332
        %377 = vmatprep.subr.mxu0 0.0
        %378 = vmatpush1.xpose.msra.mxu0 %v335
        %379 = vmatprep.subr.mxu0 0.0
        %380 = vmatpush1.xpose.msra.mxu0 %v338
        %381 = vmatprep.subr.mxu0 0.0
        %382 = vmatpush1.xpose.msra.mxu0 %v341
        %383 = vmatprep.subr.mxu0 0.0
        %384 = vmatpush1.xpose.msra.mxu0 %v344
        %385 = vmatprep.subr.mxu0 0.0
        %386 = vmatpush1.xpose.msra.mxu0 %v347
        %387 = vmatprep.subr.mxu0 0.0
        %388 = vmatpush1.xpose.msra.mxu0 %v350
        %389 = vmatprep.subr.mxu0 0.0
        %390 = vmatpush1.xpose.msra.mxu0 %v353
        %391 = vmatprep.subr.mxu0 0.0
        %392 = vmatpush1.xpose.msra.mxu0 %v356
        %393 = vmatprep.subr.mxu0 0.0
        %394 = vmatpush1.xpose.msra.mxu0 %v359
        %395 = vmatprep.subr.mxu0 0.0
        %396 = vmatpush1.xpose.msra.mxu0 %v362
        %397 = vmatprep.subr.mxu0 0.0
        %398 = vmatpush1.xpose.msra.mxu0 %v365
        %399 = vmatprep.subr.mxu0 0.0
        %400 = vmatpush1.xpose.msra.mxu0 0.0
        %401 = vmatprep.subr.mxu0 0.0
        %402 = vmatpush1.xpose.msra.mxu0 0.0
        %403 = vmatprep.subr.mxu0 0.0
        %404 = vmatpush1.xpose.msra.mxu0 0.0
        %405 = vmatprep.subr.mxu0 0.0
        %406 = vmatpush1.xpose.msra.mxu0 0.0
        %407 = vmatprep.subr.mxu0 0.0
        %408 = vmatpush1.xpose.msra.mxu0 0.0
        %409 = vmatprep.subr.mxu0 0.0
        %410 = vmatpush1.xpose.msra.mxu0 0.0
        %411 = vmatprep.subr.mxu0 0.0
        %412 = vmatpush1.xpose.msra.mxu0 0.0
        %413 = vmatprep.subr.mxu0 0.0
        %414 = vmatpush1.xpose.msra.mxu0 0.0
        %415 = vmatprep.subr.mxu0 0.0
        %416 = vmatpush1.xpose.msra.mxu0 0.0
        %417 = vmatprep.subr.mxu0 0.0
        %418 = vmatpush1.xpose.msra.mxu0 0.0
        %419 = vmatprep.subr.mxu0 0.0
        %420 = vmatpush1.xpose.msra.mxu0 0.0
        %421 = vmatprep.subr.mxu0 0.0
        %422 = vmatpush1.xpose.msra.mxu0 0.0
        %423 = vmatprep.subr.mxu0 0.0
        %424 = vmatpush1.xpose.msra.mxu0 0.0
        %425 = vmatprep.subr.mxu0 0.0
        %426 = vmatpush1.xpose.msra.mxu0 0.0
        %427 = vmatprep.subr.mxu0 0.0
        %428 = vmatpush1.xpose.msra.mxu0 0.0
        %429 = vmatprep.subr.mxu0 0.0
        %430 = vmatpush1.xpose.msra.mxu0 0.0
        %431 = vmatprep.mubr.f32.mxu0 0.0
        %432 = vmatmul.mubr.f32.gmra.mrb[0].mxu0 %v317
        %v433 = vpop.f32.mrb[0].mxu0
        %v434 = vadd.f32 0.0, %v433
        %v435 = vpop.f32.mrb[0].mxu0
        %436 = vdwg.mxu0
        %v437 = vld [vmem:[#allocation2] sm:$0xff]
        %438 = vmax.xlane.f32.xlu0 %v434
        %v439 = vpop.xlane.xlu0 %438
        %v440 = vmax.f32 %v437, %v439
        %v441 = vsub.f32 %v437, %v440
        %v442 = vmul.f32 %v441, 1.442695
        %v443 = vpow.pop %v442
        %445 = vset.pattern.permute.xlu0 0
        %446 = vperm.xlu0 %445, %v440
        %v447 = vpop.permute.xlu0 %446
        %v449 = vsub.f32 %v434, %v447
        %v450 = vmul.f32 %v449, 1.442695
        %v451 = vpow.pop %v450
        %s452 = smul.u32 %s24, 128
        %v453 = vlaneseq
        %v454 = vand.u32 %v453, 127
        %v455 = vstv %s452
        %v456 = vadd.s32 %v455, %v454
        %vm457 = vcmp.lt.s32.totalorder %v456, 8
        %v458 = vsel %vm457, %v451, 0.0
        %v459 = vld [vmem:[#allocation3] sm:$0xff]
        %v460 = vmul.f32 %v443, %v459
        %461 = vadd.xlane.f32.xlu0 %v458
        %v462 = vpop.xlane.xlu0 %461
        %v463 = vadd.f32 %v460, %v462
        %vm464 = vcmask 7168
        %465 = vst.msk [vmem:[#allocation3] sm:$0xff] %vm464, %v463
        %v466 = vld [vmem:[#allocation4] sm:$0xff]
        %468 = vset.pattern.permute.xlu0 0
        %469 = vperm.xlu0 %468, %v443
        %v470 = vpop.permute.xlu0 %469
        %v472 = vmul.f32 %v470, %v466
        %473 = vmatprep.subr.mxu0 0.0
        %474 = vmatpush1.msra.mxu0 %v299
        %475 = vmatprep.subr.mxu0 0.0
        %476 = vmatpush1.msra.mxu0 %v300
        %477 = vmatprep.subr.mxu0 0.0
        %478 = vmatpush1.msra.mxu0 %v301
        %479 = vmatprep.subr.mxu0 0.0
        %480 = vmatpush1.msra.mxu0 %v302
        %481 = vmatprep.subr.mxu0 0.0
        %482 = vmatpush1.msra.mxu0 %v303
        %483 = vmatprep.subr.mxu0 0.0
        %484 = vmatpush1.msra.mxu0 %v304
        %485 = vmatprep.subr.mxu0 0.0
        %486 = vmatpush1.msra.mxu0 %v305
        %487 = vmatprep.subr.mxu0 0.0
        %488 = vmatpush1.msra.mxu0 %v306
        %489 = vmatprep.subr.mxu0 0.0
        %490 = vmatpush1.msra.mxu0 %v307
        %491 = vmatprep.subr.mxu0 0.0
        %492 = vmatpush1.msra.mxu0 %v308
        %493 = vmatprep.subr.mxu0 0.0
        %494 = vmatpush1.msra.mxu0 %v309
        %495 = vmatprep.subr.mxu0 0.0
        %496 = vmatpush1.msra.mxu0 %v310
        %497 = vmatprep.subr.mxu0 0.0
        %498 = vmatpush1.msra.mxu0 %v311
        %499 = vmatprep.subr.mxu0 0.0
        %500 = vmatpush1.msra.mxu0 %v312
        %501 = vmatprep.subr.mxu0 0.0
        %502 = vmatpush1.msra.mxu0 %v313
        %503 = vmatprep.subr.mxu0 0.0
        %504 = vmatpush1.msra.mxu0 %v314
        %505 = vmatprep.subr.mxu0 0.0
        %506 = vmatpush1.msra.mxu0 0.0
        %507 = vmatprep.subr.mxu0 0.0
        %508 = vmatpush1.msra.mxu0 0.0
        %509 = vmatprep.subr.mxu0 0.0
        %510 = vmatpush1.msra.mxu0 0.0
        %511 = vmatprep.subr.mxu0 0.0
        %512 = vmatpush1.msra.mxu0 0.0
        %513 = vmatprep.subr.mxu0 0.0
        %514 = vmatpush1.msra.mxu0 0.0
        %515 = vmatprep.subr.mxu0 0.0
        %516 = vmatpush1.msra.mxu0 0.0
        %517 = vmatprep.subr.mxu0 0.0
        %518 = vmatpush1.msra.mxu0 0.0
        %519 = vmatprep.subr.mxu0 0.0
        %520 = vmatpush1.msra.mxu0 0.0
        %521 = vmatprep.subr.mxu0 0.0
        %522 = vmatpush1.msra.mxu0 0.0
        %523 = vmatprep.subr.mxu0 0.0
        %524 = vmatpush1.msra.mxu0 0.0
        %525 = vmatprep.subr.mxu0 0.0
        %526 = vmatpush1.msra.mxu0 0.0
        %527 = vmatprep.subr.mxu0 0.0
        %528 = vmatpush1.msra.mxu0 0.0
        %529 = vmatprep.subr.mxu0 0.0
        %530 = vmatpush1.msra.mxu0 0.0
        %531 = vmatprep.subr.mxu0 0.0
        %532 = vmatpush1.msra.mxu0 0.0
        %533 = vmatprep.subr.mxu0 0.0
        %534 = vmatpush1.msra.mxu0 0.0
        %535 = vmatprep.subr.mxu0 0.0
        %536 = vmatpush1.msra.mxu0 0.0
        %537 = vmatprep.mubr.f32.mxu0 0.0
        %538 = vmatmul.mubr.f32.gmra.mrb[0].mxu0 %v458
        %v539 = vpop.f32.mrb[0].mxu0
        %v540 = vadd.f32 0.0, %v539
        %v541 = vpop.f32.mrb[0].mxu0
        %542 = vdwg.mxu0
        %v543 = vadd.f32 %v472, %v540
        %544 = vst.msk [vmem:[#allocation4] sm:$0xff] %vm315, %v543
        %545 = vst.msk [vmem:[#allocation2] sm:$0xff] %vm464, %v440
        // Predicated region
        $region37: #{tpu_custom_call.1} parent=31 // pred_check
          %p546 = pneg %p270
        $region38: #{tpu_custom_call.1} parent=31 // pred_check_branch
          %548 = sbr.rel (%p546) target = $region40
        $region39: #{tpu_custom_call.1} parent=31 // pred_region
          %v549 = vld [vmem:[#allocation3] sm:$0xff]
          %v550 = vrcp.pop %v549
          %v551 = vmul.f32 %v549, %v550
          %v552 = vsub.f32 2.0, %v551
          %v553 = vmul.f32 %v550, %v552
          %v554 = vld [vmem:[#allocation4] sm:$0xff]
          %556 = vset.pattern.permute.xlu0 0
          %557 = vperm.xlu0 %556, %v553
          %v558 = vpop.permute.xlu0 %557
          %v560 = vmul.f32 %v554, %v558
          %561 = vst.msk [vmem:[%s242] sm:$0xff] %vm315, %v560
        $region40: #{tpu_custom_call.1} parent=31 // pred_fallthru
          _
        %s562 = sand.u32 %s130, 1
        %s563 = scalar_lea.sflag [#allocation7], %s562
        %s564 = sand.u32 %s130, 1
        %s565 = smul.addr %s564, 8
        %s566 = scalar_lea.vmem [#allocation6], %s565
        // Predicated region
        $region41: #{tpu_custom_call.1} parent=31 // pred_check
          %p567 = pneg %p140
        $region42: #{tpu_custom_call.1} parent=31 // pred_check_branch
          %569 = sbr.rel (%p567) target = $region44
        $region43: #{tpu_custom_call.1} parent=31 // pred_region
          %s571 = ssub.s32 128, 128
          %572 = vsyncadd %s563, %s571
          %s573 = sadd.s32 %s23, %s22
          %s574 = smul.addr %s573, 128
          %s575 = scalar_lea.hbm %s3, %s574
          %s577 = sshll.u32 %s566, 4
          %s578 = int_to_ptr.vmem [resolvable:$true] %s577
          %580 = dma.vmem_to_hbm [thread:$0]  %s578, 128, %s575, %s563
        $region44: #{tpu_custom_call.1} parent=31 // pred_fallthru
          _
      $region32: #{tpu_custom_call.1} parent=5 // pred_fallthru
        _
      %p581 = scmp.le.s32.totalorder 2, %s12
      // Predicated region
      $region45: #{tpu_custom_call.1} parent=5 // pred_check
        %p582 = pneg %p581
      $region46: #{tpu_custom_call.1} parent=5 // pred_check_branch
        %584 = sbr.rel (%p582) target = $region48
      $region47: #{tpu_custom_call.1} parent=5 // pred_region
        %s585 = ssub.s32 %s12, 2
        // Predicated region
        $region49: #{tpu_custom_call.1} parent=47 // pred_check
          %p586 = pneg %p146
        $region50: #{tpu_custom_call.1} parent=47 // pred_check_branch
          %588 = sbr.rel (%p586) target = $region52
        $region51: #{tpu_custom_call.1} parent=47 // pred_region
          %s589 = sand.u32 %s131, 1
          %s590 = scalar_lea.sflag [#allocation7], %s589
          %s591 = sand.u32 %s131, 1
          %s592 = smul.addr %s591, 8
          %s593 = scalar_lea.vmem [#allocation6], %s592
          %594 = dma.done %s590, 128
        $region52: #{tpu_custom_call.1} parent=47 // pred_fallthru
          _
      $region48: #{tpu_custom_call.1} parent=5 // pred_fallthru
        _
    $region6: #{tpu_custom_call.1} parent=1 // loop_footer
      %s16 = sadd.s32 1, %s12
    $region7: #{tpu_custom_call.1} parent=1 // loop_footer_branch
      %11 = sbr.rel target = $region3
    $region8: #{tpu_custom_call.1} parent=1 // loop_exit
      _
    %595 = vsyncpa [#allocation7], 1
    %s596 = scalar_lea.sflag [#allocation7], 1
    %597 = vsyncpa %s596, 1

</llo_original>
